<compile_context>
chip_gen: v7x
topology: tpu7x:2x2x1
jax: 0.10.0
libtpu: 0.0.40
codegen_flags: <defaults>
</compile_context>

<pallas_src>
import functools
import math

import jax
import jax.numpy as jnp
from jax.experimental import pallas as pl
from jax.experimental.pallas import tpu as pltpu


def _causal_attn_kernel(x_ref, w_attn_ref, b_attn_ref, w_proj_ref, b_proj_ref,
                        bias_ref, o_ref, y_scratch, *, n_head):
    x = x_ref[0]                               # (T, C), bf16
    T, C = x.shape
    hd = C // n_head
    scale = 1.0 / math.sqrt(hd)

    # ---- QKV projection: bf16 MXU operands, f32 accumulation, f32 bias --------
    qkv = jnp.dot(x, w_attn_ref[...], preferred_element_type=jnp.float32)
    qkv = qkv + b_attn_ref[...]                # (T, 3C) + (1, 3C) row broadcast

    q = qkv[:, :C] * scale                     # fold 1/sqrt(hd) into Q (f32, T*C muls)
    k = qkv[:, C:2 * C]
    v = qkv[:, 2 * C:]

    def to_heads(t):                           # (T, C) -> (n_head, T, hd), bf16
        return jnp.stack(
            [t[:, h * hd:(h + 1) * hd] for h in range(n_head)], axis=0
        ).astype(jnp.bfloat16)

    qh, kh, vh = to_heads(q), to_heads(k), to_heads(v)

    # ---- Scores for all heads in one batched MXU matmul (no K transpose) ------
    s = jax.lax.dot_general(
        qh, kh,
        dimension_numbers=(((2,), (2,)), ((0,), (0,))),      # 'htd,hsd->hts'
        preferred_element_type=jnp.float32)                  # (H, T, T) f32
    s = s + bias_ref[...]                      # additive causal mask (T, T), bcast over H

    # ---- Softmax in f32 (VPU); EUP approx reciprocal for the normalization ----
    m = jnp.max(s, axis=-1, keepdims=True)
    p = jnp.exp(s - m)
    denom = jnp.sum(p, axis=-1, keepdims=True)          # >= 1 (diagonal contributes 1)
    p = p * pl.reciprocal(denom, approx=True)

    # ---- Weighted values, batched over heads -----------------------------------
    y = jax.lax.dot_general(
        p.astype(jnp.bfloat16), vh,
        dimension_numbers=(((2,), (1,)), ((0,), (0,))),      # 'hts,hsd->htd'
        preferred_element_type=jnp.float32)                  # (H, T, hd) f32

    # ---- Reassemble heads along lanes via static-offset scratch writes ---------
    for h in range(n_head):
        y_scratch[:, h * hd:(h + 1) * hd] = y[h]

    # ---- Output projection ------------------------------------------------------
    out = jnp.dot(y_scratch[...].astype(jnp.bfloat16), w_proj_ref[...],
                  preferred_element_type=jnp.float32)
    out = out + b_proj_ref[...]
    o_ref[0] = out.astype(o_ref.dtype)


def causal_self_attention(x, w_attn, b_attn, w_proj, b_proj, *, n_head):
    B, T, C = x.shape
    assert C % n_head == 0
    out_dtype = x.dtype

    # Wrapper-side layout / dtype plumbing (free relative to kernel cost):
    #  * bf16 activations & weights -> MXU-native operands, half the weight DMA bytes
    #  * additive causal bias precomputed once; constant index_map => DMA'd once.
    x_bf = x.astype(jnp.bfloat16)
    w_attn_bf = w_attn.astype(jnp.bfloat16)
    w_proj_bf = w_proj.astype(jnp.bfloat16)
    causal_bias = jnp.where(jnp.tril(jnp.ones((T, T), dtype=bool)),
                            jnp.float32(0.0), -jnp.inf).astype(jnp.float32)

    kernel = functools.partial(_causal_attn_kernel, n_head=n_head)
    return pl.pallas_call(
        kernel,
        out_shape=jax.ShapeDtypeStruct((B, T, C), out_dtype),
        grid=(B,),
        in_specs=[
            pl.BlockSpec((1, T, C), lambda b: (b, 0, 0)),      # x: one batch per step
            pl.BlockSpec((C, 3 * C), lambda b: (0, 0)),        # qkv weight (bf16, full)
            pl.BlockSpec((1, 3 * C), lambda b: (0, 0)),        # qkv bias (f32 row)
            pl.BlockSpec((C, C), lambda b: (0, 0)),            # proj weight (bf16, full)
            pl.BlockSpec((1, C), lambda b: (0, 0)),            # proj bias (f32 row)
            pl.BlockSpec((T, T), lambda b: (0, 0)),            # additive causal mask
        ],
        out_specs=pl.BlockSpec((1, T, C), lambda b: (b, 0, 0)),
        scratch_shapes=[pltpu.VMEM((T, C), jnp.float32)],      # head-reassembly slab
        compiler_params=pltpu.CompilerParams(
            dimension_semantics=("parallel",),   # shard batch across v7x's 2 TCs
            vmem_limit_bytes=64 * 1024 * 1024,
        ),
    )(x_bf, w_attn_bf, b_attn, w_proj_bf, b_proj, causal_bias)


def _reference_f32(x, w_attn, b_attn, w_proj, b_proj, n_head):
    """Pure-f32 JAX reference matching torch CausalSelfAttention.forward."""
    B, T, C = x.shape
    hd = C // n_head
    qkv = x @ w_attn + b_attn
    q, k, v = jnp.split(qkv, 3, axis=-1)

    def heads(t):
        return t.reshape(B, T, n_head, hd).transpose(0, 2, 1, 3)

    q, k, v = heads(q), heads(k), heads(v)
    s = jnp.einsum('bhqd,bhkd->bhqk', q, k) / math.sqrt(hd)
    mask = jnp.tril(jnp.ones((T, T), dtype=bool))
    s = jnp.where(mask, s, -jnp.inf)
    p = jax.nn.softmax(s, axis=-1)
    y = jnp.einsum('bhqk,bhkd->bhqd', p, v)
    y = y.transpose(0, 2, 1, 3).reshape(B, T, C)
    return y @ w_proj + b_proj


def _reference_matched(x, w_attn, b_attn, w_proj, b_proj, n_head):
    """Same math as the kernel: bf16 MXU operands, f32 accumulation & softmax."""
    B, T, C = x.shape
    hd = C // n_head
    bf, f32 = jnp.bfloat16, jnp.float32
    qkv = jnp.einsum('btc,cd->btd', x.astype(bf), w_attn.astype(bf),
                     preferred_element_type=f32) + b_attn
    q, k, v = jnp.split(qkv, 3, axis=-1)
    q = q * (1.0 / math.sqrt(hd))

    def heads(t):
        return t.reshape(B, T, n_head, hd).transpose(0, 2, 1, 3).astype(bf)

    qh, kh, vh = heads(q), heads(k), heads(v)
    s = jnp.einsum('bhqd,bhkd->bhqk', qh, kh, preferred_element_type=f32)
    mask = jnp.tril(jnp.ones((T, T), dtype=bool))
    s = jnp.where(mask, s, -jnp.inf)
    p = jax.nn.softmax(s, axis=-1)
    y = jnp.einsum('bhqk,bhkd->bhqd', p.astype(bf), vh, preferred_element_type=f32)
    y = y.transpose(0, 2, 1, 3).reshape(B, T, C)
    return jnp.einsum('btc,cd->btd', y.astype(bf), w_proj.astype(bf),
                      preferred_element_type=f32) + b_proj


if __name__ == "__main__":
    # Config: n_embd=32, n_head=4 (head_dim=8), batch=2, seq=8
    B, T, C, n_head = 2, 8, 32, 4

    key = jax.random.PRNGKey(0)
    kx, k1, k2, k3, k4 = jax.random.split(key, 5)

    x = jax.random.normal(kx, (B, T, C), dtype=jnp.float32)
    # nn.Linear(C, 3C) / nn.Linear(C, C) params, stored transposed for x @ W layout.
    w_attn = jax.random.normal(k1, (C, 3 * C), dtype=jnp.float32) * 0.02
    b_attn = (jax.random.normal(k2, (3 * C,), dtype=jnp.float32) * 0.02).reshape(1, 3 * C)
    w_proj = jax.random.normal(k3, (C, C), dtype=jnp.float32) * 0.02
    b_proj = (jax.random.normal(k4, (C,), dtype=jnp.float32) * 0.02).reshape(1, C)

    out = causal_self_attention(x, w_attn, b_attn, w_proj, b_proj, n_head=n_head)
    out = jax.block_until_ready(out)
    assert out.shape == (B, T, C)

    # Structural check at matched (bf16-MXU / f32-softmax) precision.
    ref_m = _reference_matched(x, w_attn, b_attn, w_proj, b_proj, n_head)
    assert jnp.allclose(out, ref_m, atol=1e-3, rtol=1e-2), "kernel mismatch vs matched reference"

    # Loose sanity check vs. the full-f32 torch-equivalent reference.
    ref = _reference_f32(x, w_attn, b_attn, w_proj, b_proj, n_head)
    assert jnp.allclose(out, ref, atol=1e-2, rtol=1e-1), "kernel mismatch vs f32 reference"

    print("KERNEL_OK")
</pallas_src>

<mosaic_0001>
module attributes {stable_mosaic.version = 11 : i64} {
  func.func @_causal_attn_kernel(%arg0: i32, %arg1: memref<1x8x32xbf16, #tpu.memory_space<vmem>>, %arg2: memref<32x96xbf16, #tpu.memory_space<vmem>>, %arg3: memref<1x96xf32, #tpu.memory_space<vmem>>, %arg4: memref<32x32xbf16, #tpu.memory_space<vmem>>, %arg5: memref<1x32xf32, #tpu.memory_space<vmem>>, %arg6: memref<8x8xf32, #tpu.memory_space<vmem>>, %arg7: memref<1x8x32xf32, #tpu.memory_space<vmem>>, %arg8: memref<8x32xf32, #tpu.memory_space<vmem>>) attributes {dimension_semantics = [#tpu.dimension_semantics<parallel>], iteration_bounds = array<i64: 2>, scalar_prefetch = 0 : i64, scratch_operands = 1 : i64, tpu.core_type = #tpu.core_type<tc>, window_params = [{transform_indices = @transform_0, window_bounds = array<i64: 1, 8, 32>}, {pipeline_mode = #tpu.pipeline_mode<synchronous>, transform_indices = @transform_1, window_bounds = array<i64: 32, 96>}, {pipeline_mode = #tpu.pipeline_mode<synchronous>, transform_indices = @transform_2, window_bounds = array<i64: 1, 96>}, {pipeline_mode = #tpu.pipeline_mode<synchronous>, transform_indices = @transform_3, window_bounds = array<i64: 32, 32>}, {pipeline_mode = #tpu.pipeline_mode<synchronous>, transform_indices = @transform_4, window_bounds = array<i64: 1, 32>}, {pipeline_mode = #tpu.pipeline_mode<synchronous>, transform_indices = @transform_5, window_bounds = array<i64: 8, 8>}, {transform_indices = @transform_6, window_bounds = array<i64: 1, 8, 32>}]} {
    %c0 = arith.constant 0 : index
    %c0_0 = arith.constant 0 : index
    %c0_1 = arith.constant 0 : index
    %0 = vector.load %arg1[%c0, %c0_0, %c0_1] : memref<1x8x32xbf16, #tpu.memory_space<vmem>>, vector<1x8x32xbf16>
    %1 = vector.shape_cast %0 : vector<1x8x32xbf16> to vector<8x32xbf16>
    %c0_2 = arith.constant 0 : index
    %c0_3 = arith.constant 0 : index
    %2 = vector.load %arg2[%c0_2, %c0_3] : memref<32x96xbf16, #tpu.memory_space<vmem>>, vector<32x96xbf16>
    %cst = arith.constant dense<0.000000e+00> : vector<8x96xf32>
    %3 = tpu.matmul %1, %2, %cst {dimension_numbers = #tpu.dot_dimension_numbers<[1], [0], [0], [1], [0, 0, 1, 1], [], []>} : vector<8x32xbf16>, vector<32x96xbf16>, vector<8x96xf32> -> vector<8x96xf32>
    %c0_4 = arith.constant 0 : index
    %c0_5 = arith.constant 0 : index
    %4 = vector.load %arg3[%c0_4, %c0_5] : memref<1x96xf32, #tpu.memory_space<vmem>>, vector<1x96xf32>
    %5 = vector.broadcast %4 : vector<1x96xf32> to vector<8x96xf32>
    %6 = arith.addf %3, %5 : vector<8x96xf32>
    %7 = vector.extract_strided_slice %6 {offsets = [0, 0], sizes = [8, 32], strides = [1, 1]} : vector<8x96xf32> to vector<8x32xf32>
    %cst_6 = arith.constant 0.353553385 : f32
    %8 = vector.broadcast %cst_6 : f32 to vector<8x32xf32>
    %9 = arith.mulf %7, %8 : vector<8x32xf32>
    %10 = vector.extract_strided_slice %6 {offsets = [0, 32], sizes = [8, 32], strides = [1, 1]} : vector<8x96xf32> to vector<8x32xf32>
    %11 = vector.extract_strided_slice %6 {offsets = [0, 64], sizes = [8, 32], strides = [1, 1]} : vector<8x96xf32> to vector<8x32xf32>
    %12 = vector.extract_strided_slice %9 {offsets = [0, 0], sizes = [8, 8], strides = [1, 1]} : vector<8x32xf32> to vector<8x8xf32>
    %13 = vector.extract_strided_slice %9 {offsets = [0, 8], sizes = [8, 8], strides = [1, 1]} : vector<8x32xf32> to vector<8x8xf32>
    %14 = vector.extract_strided_slice %9 {offsets = [0, 16], sizes = [8, 8], strides = [1, 1]} : vector<8x32xf32> to vector<8x8xf32>
    %15 = vector.extract_strided_slice %9 {offsets = [0, 24], sizes = [8, 8], strides = [1, 1]} : vector<8x32xf32> to vector<8x8xf32>
    %16 = vector.shape_cast %12 : vector<8x8xf32> to vector<1x8x8xf32>
    %17 = vector.shape_cast %13 : vector<8x8xf32> to vector<1x8x8xf32>
    %18 = vector.shape_cast %14 : vector<8x8xf32> to vector<1x8x8xf32>
    %19 = vector.shape_cast %15 : vector<8x8xf32> to vector<1x8x8xf32>
    %20 = tpu.concatenate %16, %17, %18, %19 in 0 : vector<1x8x8xf32>, vector<1x8x8xf32>, vector<1x8x8xf32>, vector<1x8x8xf32> -> vector<4x8x8xf32>
    %21 = arith.truncf %20 : vector<4x8x8xf32> to vector<4x8x8xbf16>
    %22 = vector.extract_strided_slice %10 {offsets = [0, 0], sizes = [8, 8], strides = [1, 1]} : vector<8x32xf32> to vector<8x8xf32>
    %23 = vector.extract_strided_slice %10 {offsets = [0, 8], sizes = [8, 8], strides = [1, 1]} : vector<8x32xf32> to vector<8x8xf32>
    %24 = vector.extract_strided_slice %10 {offsets = [0, 16], sizes = [8, 8], strides = [1, 1]} : vector<8x32xf32> to vector<8x8xf32>
    %25 = vector.extract_strided_slice %10 {offsets = [0, 24], sizes = [8, 8], strides = [1, 1]} : vector<8x32xf32> to vector<8x8xf32>
    %26 = vector.shape_cast %22 : vector<8x8xf32> to vector<1x8x8xf32>
    %27 = vector.shape_cast %23 : vector<8x8xf32> to vector<1x8x8xf32>
    %28 = vector.shape_cast %24 : vector<8x8xf32> to vector<1x8x8xf32>
    %29 = vector.shape_cast %25 : vector<8x8xf32> to vector<1x8x8xf32>
    %30 = tpu.concatenate %26, %27, %28, %29 in 0 : vector<1x8x8xf32>, vector<1x8x8xf32>, vector<1x8x8xf32>, vector<1x8x8xf32> -> vector<4x8x8xf32>
    %31 = arith.truncf %30 : vector<4x8x8xf32> to vector<4x8x8xbf16>
    %32 = vector.extract_strided_slice %11 {offsets = [0, 0], sizes = [8, 8], strides = [1, 1]} : vector<8x32xf32> to vector<8x8xf32>
    %33 = vector.extract_strided_slice %11 {offsets = [0, 8], sizes = [8, 8], strides = [1, 1]} : vector<8x32xf32> to vector<8x8xf32>
    %34 = vector.extract_strided_slice %11 {offsets = [0, 16], sizes = [8, 8], strides = [1, 1]} : vector<8x32xf32> to vector<8x8xf32>
    %35 = vector.extract_strided_slice %11 {offsets = [0, 24], sizes = [8, 8], strides = [1, 1]} : vector<8x32xf32> to vector<8x8xf32>
    %36 = vector.shape_cast %32 : vector<8x8xf32> to vector<1x8x8xf32>
    %37 = vector.shape_cast %33 : vector<8x8xf32> to vector<1x8x8xf32>
    %38 = vector.shape_cast %34 : vector<8x8xf32> to vector<1x8x8xf32>
    %39 = vector.shape_cast %35 : vector<8x8xf32> to vector<1x8x8xf32>
    %40 = tpu.concatenate %36, %37, %38, %39 in 0 : vector<1x8x8xf32>, vector<1x8x8xf32>, vector<1x8x8xf32>, vector<1x8x8xf32> -> vector<4x8x8xf32>
    %41 = arith.truncf %40 : vector<4x8x8xf32> to vector<4x8x8xbf16>
    %cst_7 = arith.constant dense<0.000000e+00> : vector<4x8x8xf32>
    %42 = tpu.matmul %21, %31, %cst_7 {dimension_numbers = #tpu.dot_dimension_numbers<[2], [2], [1], [1], [0, 0, 0, 1, 1, 1], [0], [0]>} : vector<4x8x8xbf16>, vector<4x8x8xbf16>, vector<4x8x8xf32> -> vector<4x8x8xf32>
    %c0_8 = arith.constant 0 : index
    %c0_9 = arith.constant 0 : index
    %43 = vector.load %arg6[%c0_8, %c0_9] : memref<8x8xf32, #tpu.memory_space<vmem>>, vector<8x8xf32>
    %44 = vector.shape_cast %43 : vector<8x8xf32> to vector<1x8x8xf32>
    %45 = vector.broadcast %44 : vector<1x8x8xf32> to vector<4x8x8xf32>
    %46 = arith.addf %42, %45 : vector<4x8x8xf32>
    %cst_10 = arith.constant dense<0xFF800000> : vector<4x8xf32>
    %47 = vector.multi_reduction <maximumf>, %46, %cst_10 [2] : vector<4x8x8xf32> to vector<4x8xf32>
    %48 = vector.shape_cast %47 : vector<4x8xf32> to vector<4x8x1xf32>
    %49 = vector.broadcast %48 : vector<4x8x1xf32> to vector<4x8x8xf32>
    %50 = arith.subf %46, %49 : vector<4x8x8xf32>
    %51 = math.exp %50 : vector<4x8x8xf32>
    %cst_11 = arith.constant dense<0.000000e+00> : vector<4x8xf32>
    %52 = vector.multi_reduction <add>, %51, %cst_11 [2] : vector<4x8x8xf32> to vector<4x8xf32>
    %53 = vector.shape_cast %52 : vector<4x8xf32> to vector<4x8x1xf32>
    %54 = tpu.reciprocal %53 {approx = true} : vector<4x8x1xf32> -> vector<4x8x1xf32>
    %55 = vector.broadcast %54 : vector<4x8x1xf32> to vector<4x8x8xf32>
    %56 = arith.mulf %51, %55 : vector<4x8x8xf32>
    %57 = arith.truncf %56 : vector<4x8x8xf32> to vector<4x8x8xbf16>
    %cst_12 = arith.constant dense<0.000000e+00> : vector<4x8x8xf32>
    %58 = tpu.matmul %57, %41, %cst_12 {dimension_numbers = #tpu.dot_dimension_numbers<[2], [1], [1], [2], [0, 0, 0, 1, 1, 2], [0], [0]>} : vector<4x8x8xbf16>, vector<4x8x8xbf16>, vector<4x8x8xf32> -> vector<4x8x8xf32>
    %59 = vector.extract_strided_slice %58 {offsets = [0, 0, 0], sizes = [1, 8, 8], strides = [1, 1, 1]} : vector<4x8x8xf32> to vector<1x8x8xf32>
    %60 = vector.shape_cast %59 : vector<1x8x8xf32> to vector<8x8xf32>
    %c0_13 = arith.constant 0 : index
    %c0_14 = arith.constant 0 : index
    %61 = vector.load %arg8[%c0_13, %c0_14] : memref<8x32xf32, #tpu.memory_space<vmem>>, vector<8x8xf32>
    tpu.vector_store %arg8[%c0_13, %c0_14], %60 {strides = array<i32>} : memref<8x32xf32, #tpu.memory_space<vmem>>, vector<8x8xf32>,
    %62 = vector.extract_strided_slice %58 {offsets = [1, 0, 0], sizes = [1, 8, 8], strides = [1, 1, 1]} : vector<4x8x8xf32> to vector<1x8x8xf32>
    %63 = vector.shape_cast %62 : vector<1x8x8xf32> to vector<8x8xf32>
    %c0_15 = arith.constant 0 : index
    %c8 = arith.constant 8 : index
    %64 = vector.load %arg8[%c0_15, %c8] : memref<8x32xf32, #tpu.memory_space<vmem>>, vector<8x8xf32>
    tpu.vector_store %arg8[%c0_15, %c8], %63 {strides = array<i32>} : memref<8x32xf32, #tpu.memory_space<vmem>>, vector<8x8xf32>,
    %65 = vector.extract_strided_slice %58 {offsets = [2, 0, 0], sizes = [1, 8, 8], strides = [1, 1, 1]} : vector<4x8x8xf32> to vector<1x8x8xf32>
    %66 = vector.shape_cast %65 : vector<1x8x8xf32> to vector<8x8xf32>
    %c0_16 = arith.constant 0 : index
    %c16 = arith.constant 16 : index
    %67 = vector.load %arg8[%c0_16, %c16] : memref<8x32xf32, #tpu.memory_space<vmem>>, vector<8x8xf32>
    tpu.vector_store %arg8[%c0_16, %c16], %66 {strides = array<i32>} : memref<8x32xf32, #tpu.memory_space<vmem>>, vector<8x8xf32>,
    %68 = vector.extract_strided_slice %58 {offsets = [3, 0, 0], sizes = [1, 8, 8], strides = [1, 1, 1]} : vector<4x8x8xf32> to vector<1x8x8xf32>
    %69 = vector.shape_cast %68 : vector<1x8x8xf32> to vector<8x8xf32>
    %c0_17 = arith.constant 0 : index
    %c24 = arith.constant 24 : index
    %70 = vector.load %arg8[%c0_17, %c24] : memref<8x32xf32, #tpu.memory_space<vmem>>, vector<8x8xf32>
    tpu.vector_store %arg8[%c0_17, %c24], %69 {strides = array<i32>} : memref<8x32xf32, #tpu.memory_space<vmem>>, vector<8x8xf32>,
    %c0_18 = arith.constant 0 : index
    %c0_19 = arith.constant 0 : index
    %71 = vector.load %arg8[%c0_18, %c0_19] : memref<8x32xf32, #tpu.memory_space<vmem>>, vector<8x32xf32>
    %72 = arith.truncf %71 : vector<8x32xf32> to vector<8x32xbf16>
    %c0_20 = arith.constant 0 : index
    %c0_21 = arith.constant 0 : index
    %73 = vector.load %arg4[%c0_20, %c0_21] : memref<32x32xbf16, #tpu.memory_space<vmem>>, vector<32x32xbf16>
    %cst_22 = arith.constant dense<0.000000e+00> : vector<8x32xf32>
    %74 = tpu.matmul %72, %73, %cst_22 {dimension_numbers = #tpu.dot_dimension_numbers<[1], [0], [0], [1], [0, 0, 1, 1], [], []>} : vector<8x32xbf16>, vector<32x32xbf16>, vector<8x32xf32> -> vector<8x32xf32>
    %c0_23 = arith.constant 0 : index
    %c0_24 = arith.constant 0 : index
    %75 = vector.load %arg5[%c0_23, %c0_24] : memref<1x32xf32, #tpu.memory_space<vmem>>, vector<1x32xf32>
    %76 = vector.broadcast %75 : vector<1x32xf32> to vector<8x32xf32>
    %77 = arith.addf %74, %76 : vector<8x32xf32>
    %c0_25 = arith.constant 0 : index
    %c0_26 = arith.constant 0 : index
    %c0_27 = arith.constant 0 : index
    %78 = vector.load %arg7[%c0_25, %c0_26, %c0_27] : memref<1x8x32xf32, #tpu.memory_space<vmem>>, vector<1x8x32xf32>
    %79 = vector.shape_cast %78 : vector<1x8x32xf32> to vector<8x32xf32>
    %80 = vector.shape_cast %77 : vector<8x32xf32> to vector<1x8x32xf32>
    tpu.vector_store %arg7[%c0_25, %c0_26, %c0_27], %80 {strides = array<i32>} : memref<1x8x32xf32, #tpu.memory_space<vmem>>, vector<1x8x32xf32>,
    return
  }
  func.func @transform_0(%arg0: i32) -> (i32, i32, i32) {
    %c0_i32 = arith.constant 0 : i32
    %c0_i32_0 = arith.constant 0 : i32
    %c0_i32_1 = arith.constant 0 : i32
    return %arg0, %c0_i32, %c0_i32_0 : i32, i32, i32
  }
  func.func @transform_1(%arg0: i32) -> (i32, i32) {
    %c0_i32 = arith.constant 0 : i32
    %c0_i32_0 = arith.constant 0 : i32
    %c0_i32_1 = arith.constant 0 : i32
    return %c0_i32, %c0_i32_0 : i32, i32
  }
  func.func @transform_2(%arg0: i32) -> (i32, i32) {
    %c0_i32 = arith.constant 0 : i32
    %c0_i32_0 = arith.constant 0 : i32
    %c0_i32_1 = arith.constant 0 : i32
    return %c0_i32, %c0_i32_0 : i32, i32
  }
  func.func @transform_3(%arg0: i32) -> (i32, i32) {
    %c0_i32 = arith.constant 0 : i32
    %c0_i32_0 = arith.constant 0 : i32
    %c0_i32_1 = arith.constant 0 : i32
    return %c0_i32, %c0_i32_0 : i32, i32
  }
  func.func @transform_4(%arg0: i32) -> (i32, i32) {
    %c0_i32 = arith.constant 0 : i32
    %c0_i32_0 = arith.constant 0 : i32
    %c0_i32_1 = arith.constant 0 : i32
    return %c0_i32, %c0_i32_0 : i32, i32
  }
  func.func @transform_5(%arg0: i32) -> (i32, i32) {
    %c0_i32 = arith.constant 0 : i32
    %c0_i32_0 = arith.constant 0 : i32
    %c0_i32_1 = arith.constant 0 : i32
    return %c0_i32, %c0_i32_0 : i32, i32
  }
  func.func @transform_6(%arg0: i32) -> (i32, i32, i32) {
    %c0_i32 = arith.constant 0 : i32
    %c0_i32_0 = arith.constant 0 : i32
    %c0_i32_1 = arith.constant 0 : i32
    return %arg0, %c0_i32, %c0_i32_0 : i32, i32, i32
  }
}

</mosaic_0001>

<llo_original>
// kernel: tpu_custom_call.1
$region0: #{tpu_custom_call.1}
  #allocation0 [shape = 'u32[]', space=smem, size = 0x4, offset = 0x4, fixed_abs, tag = 'smem constant byte address 0x4 - core index']
  #allocation1 [shape = 'u32[144,128]{1,0:T(1,128)}', space=vmem, size = 0x12000, scoped, tag = 'internal scratch']
  #allocation2 [shape = 'f32[8,32]{1,0:T(8,128)}', space=vmem, size = 0x1000, scoped, tag = 'scratch operand']
  %s0 = inlined_call_operand.hbm [shape: bf16[2,8,32], index: 0, kind: input, shape index: {}]
  %s1 = inlined_call_operand.hbm [shape: bf16[32,96], index: 1, kind: input, shape index: {}]
  %s2 = inlined_call_operand.hbm [shape: f32[1,96], index: 2, kind: input, shape index: {}]
  %s3 = inlined_call_operand.hbm [shape: bf16[32,32], index: 3, kind: input, shape index: {}]
  %s4 = inlined_call_operand.hbm [shape: f32[1,32], index: 4, kind: input, shape index: {}]
  %s5 = inlined_call_operand.hbm [shape: f32[8,8], index: 5, kind: input, shape index: {}]
  %s6 = inlined_call_operand.hbm [shape: f32[2,8,32], index: 6, kind: output, shape index: {}]
  %s7 = sld [smem:[#allocation0]]
  $region81: #{tpu_custom_call.1} parent=0
    _
  %s9 = ssub.s32 1, %s7
  %s10 = scalar_select 0, %s9, %s7
  $region1: #{tpu_custom_call.1} parent=0
    #allocation3 [shape = 'u8[4096]{0}', space=vmem, size = 0x1000, scoped, tag = 'input window, operand 0']
    #allocation4 [shape = 's32[2]{0}', space=sflag, size = 0x8, scoped, tag = 'scoped memory for tpu_custom_call.1']
    #allocation5 [shape = 's32[2]{0}', space=sflag, size = 0x8, scoped, tag = 'scoped memory for tpu_custom_call.1']
    #allocation6 [shape = 'u8[8192]{0}', space=vmem, size = 0x2000, scoped, tag = 'input window, operand 1, single buffered']
    #allocation7 [shape = 's32[1]{0}', space=sflag, size = 0x4, scoped, tag = 'scoped memory for tpu_custom_call.1']
    #allocation8 [shape = 'u8[512]{0}', space=vmem, size = 0x400, scoped, tag = 'input window, operand 2, single buffered']
    #allocation9 [shape = 'u8[8192]{0}', space=vmem, size = 0x2000, scoped, tag = 'input window, operand 3, single buffered']
    #allocation10 [shape = 's32[1]{0}', space=sflag, size = 0x4, scoped, tag = 'scoped memory for tpu_custom_call.1']
    #allocation11 [shape = 'u8[512]{0}', space=vmem, size = 0x400, scoped, tag = 'input window, operand 4, single buffered']
    #allocation12 [shape = 'u8[4096]{0}', space=vmem, size = 0x1000, scoped, tag = 'input window, operand 5, single buffered']
    #allocation13 [shape = 's32[1]{0}', space=sflag, size = 0x4, scoped, tag = 'scoped memory for tpu_custom_call.1']
    #allocation14 [shape = 'u8[8192]{0}', space=vmem, size = 0x2000, scoped, tag = 'output window, operand 0']
    %11 = vsyncpa [#allocation4], 0
    %s12 = scalar_lea.sflag [#allocation4], 1
    %13 = vsyncpa %s12, 0
    %14 = vsyncpa [#allocation7], 0
    %15 = vsyncpa [#allocation10], 0
    %16 = vsyncpa [#allocation13], 0
    %17 = vsyncpa [#allocation5], 0
    %s18 = scalar_lea.sflag [#allocation5], 1
    %19 = vsyncpa %s18, 0
    loop: start=0, step=1, limit=4
    $region2: #{tpu_custom_call.1} parent=1 // loop_pre_header
      _
    $region3: #{tpu_custom_call.1} parent=1 // loop_header
      %s21 = sphi 0, %s25
      %p22 = scmp.ge.s32.totalorder %s21, 4
      %s31 = sphi 0, %s33
      %s34 = sphi 0, %s31
      %s35 = sphi 0, %s34
      %s51 = sphi 0, %s35
      %s55 = sphi 0, %s55
      %s57 = sphi 0, %s55
      %s58 = sphi 0, %s57
      %s72 = sphi 0, %s58
      %s76 = sphi 0, %s76
      %s78 = sphi 0, %s76
      %s79 = sphi 0, %s78
      %s93 = sphi 0, %s79
      %s97 = sphi 0, %s97
      %s99 = sphi 0, %s97
      %s100 = sphi 0, %s99
      %s114 = sphi 0, %s100
      %s118 = sphi 0, %s118
      %s120 = sphi 0, %s118
      %s121 = sphi 0, %s120
      %s135 = sphi 0, %s121
      %s139 = sphi 0, %s139
      %s141 = sphi 0, %s139
      %s142 = sphi 0, %s141
      %s156 = sphi 0, %s142
      %s162 = sphi 0, %s164
      %s165 = sphi 0, %s162
      %s166 = sphi 0, %s165
      %s182 = sphi 0, %s166
    $region4: #{tpu_custom_call.1} parent=1 // loop_header_branch
      %24 = sbr.rel (%p22) target = $region8
    $region5: #{tpu_custom_call.1} parent=1 // loop_body
      %s26 = ssub.s32 %s21, 1
      %s27 = ssub.s32 %s21, 2
      %s28 = sadd.s32 %s21, 1
      %s29 = ssub.s32 %s21, %s28
      %p30 = scmp.eq.s32.totalorder %s29, 0
      %s32 = sadd.s32 %s31, 1
      %s33 = scalar_select %p30, %s31, %s32
      %p36 = pneg %p30
      %p37 = scmp.eq.s32.totalorder %s21, 1
      %p38 = por %p36, %p37
      %p39 = scmp.ne.s32.totalorder %s31, %s34
      %p40 = scmp.eq.s32.totalorder %s21, 0
      %p41 = por %p39, %p40
      %p42 = scmp.ne.s32.totalorder %s31, %s34
      %p43 = scmp.eq.s32.totalorder %s26, 1
      %p44 = por %p42, %p43
      %p45 = scmp.ne.s32.totalorder %s34, %s35
      %p46 = scmp.eq.s32.totalorder %s26, 0
      %p47 = por %p45, %p46
      %p48 = scmp.ne.s32.totalorder %s34, %s35
      %p49 = scmp.eq.s32.totalorder %s27, 1
      %p50 = por %p48, %p49
      %p52 = scmp.ne.s32.totalorder %s35, %s51
      %p53 = scmp.eq.s32.totalorder %s27, 0
      %p54 = por %p52, %p53
      %s56 = sadd.s32 %s55, 1
      %p59 = scmp.eq.s32.totalorder %s21, 1
      %p60 = scmp.ne.s32.totalorder %s55, %s57
      %p61 = scmp.eq.s32.totalorder %s21, 0
      %p62 = por %p60, %p61
      %p63 = scmp.ne.s32.totalorder %s55, %s57
      %p64 = scmp.eq.s32.totalorder %s26, 1
      %p65 = por %p63, %p64
      %p66 = scmp.ne.s32.totalorder %s57, %s58
      %p67 = scmp.eq.s32.totalorder %s26, 0
      %p68 = por %p66, %p67
      %p69 = scmp.ne.s32.totalorder %s57, %s58
      %p70 = scmp.eq.s32.totalorder %s27, 1
      %p71 = por %p69, %p70
      %p73 = scmp.ne.s32.totalorder %s58, %s72
      %p74 = scmp.eq.s32.totalorder %s27, 0
      %p75 = por %p73, %p74
      %s77 = sadd.s32 %s76, 1
      %p80 = scmp.eq.s32.totalorder %s21, 1
      %p81 = scmp.ne.s32.totalorder %s76, %s78
      %p82 = scmp.eq.s32.totalorder %s21, 0
      %p83 = por %p81, %p82
      %p84 = scmp.ne.s32.totalorder %s76, %s78
      %p85 = scmp.eq.s32.totalorder %s26, 1
      %p86 = por %p84, %p85
      %p87 = scmp.ne.s32.totalorder %s78, %s79
      %p88 = scmp.eq.s32.totalorder %s26, 0
      %p89 = por %p87, %p88
      %p90 = scmp.ne.s32.totalorder %s78, %s79
      %p91 = scmp.eq.s32.totalorder %s27, 1
      %p92 = por %p90, %p91
      %p94 = scmp.ne.s32.totalorder %s79, %s93
      %p95 = scmp.eq.s32.totalorder %s27, 0
      %p96 = por %p94, %p95
      %s98 = sadd.s32 %s97, 1
      %p101 = scmp.eq.s32.totalorder %s21, 1
      %p102 = scmp.ne.s32.totalorder %s97, %s99
      %p103 = scmp.eq.s32.totalorder %s21, 0
      %p104 = por %p102, %p103
      %p105 = scmp.ne.s32.totalorder %s97, %s99
      %p106 = scmp.eq.s32.totalorder %s26, 1
      %p107 = por %p105, %p106
      %p108 = scmp.ne.s32.totalorder %s99, %s100
      %p109 = scmp.eq.s32.totalorder %s26, 0
      %p110 = por %p108, %p109
      %p111 = scmp.ne.s32.totalorder %s99, %s100
      %p112 = scmp.eq.s32.totalorder %s27, 1
      %p113 = por %p111, %p112
      %p115 = scmp.ne.s32.totalorder %s100, %s114
      %p116 = scmp.eq.s32.totalorder %s27, 0
      %p117 = por %p115, %p116
      %s119 = sadd.s32 %s118, 1
      %p122 = scmp.eq.s32.totalorder %s21, 1
      %p123 = scmp.ne.s32.totalorder %s118, %s120
      %p124 = scmp.eq.s32.totalorder %s21, 0
      %p125 = por %p123, %p124
      %p126 = scmp.ne.s32.totalorder %s118, %s120
      %p127 = scmp.eq.s32.totalorder %s26, 1
      %p128 = por %p126, %p127
      %p129 = scmp.ne.s32.totalorder %s120, %s121
      %p130 = scmp.eq.s32.totalorder %s26, 0
      %p131 = por %p129, %p130
      %p132 = scmp.ne.s32.totalorder %s120, %s121
      %p133 = scmp.eq.s32.totalorder %s27, 1
      %p134 = por %p132, %p133
      %p136 = scmp.ne.s32.totalorder %s121, %s135
      %p137 = scmp.eq.s32.totalorder %s27, 0
      %p138 = por %p136, %p137
      %s140 = sadd.s32 %s139, 1
      %p143 = scmp.eq.s32.totalorder %s21, 1
      %p144 = scmp.ne.s32.totalorder %s139, %s141
      %p145 = scmp.eq.s32.totalorder %s21, 0
      %p146 = por %p144, %p145
      %p147 = scmp.ne.s32.totalorder %s139, %s141
      %p148 = scmp.eq.s32.totalorder %s26, 1
      %p149 = por %p147, %p148
      %p150 = scmp.ne.s32.totalorder %s141, %s142
      %p151 = scmp.eq.s32.totalorder %s26, 0
      %p152 = por %p150, %p151
      %p153 = scmp.ne.s32.totalorder %s141, %s142
      %p154 = scmp.eq.s32.totalorder %s27, 1
      %p155 = por %p153, %p154
      %p157 = scmp.ne.s32.totalorder %s142, %s156
      %p158 = scmp.eq.s32.totalorder %s27, 0
      %p159 = por %p157, %p158
      %s160 = ssub.s32 %s21, %s28
      %p161 = scmp.eq.s32.totalorder %s160, 0
      %s163 = sadd.s32 %s162, 1
      %s164 = scalar_select %p161, %s162, %s163
      %p167 = pneg %p161
      %p168 = scmp.eq.s32.totalorder %s21, 1
      %p169 = por %p167, %p168
      %p170 = scmp.ne.s32.totalorder %s162, %s165
      %p171 = scmp.eq.s32.totalorder %s21, 0
      %p172 = por %p170, %p171
      %p173 = scmp.ne.s32.totalorder %s162, %s165
      %p174 = scmp.eq.s32.totalorder %s26, 1
      %p175 = por %p173, %p174
      %p176 = scmp.ne.s32.totalorder %s165, %s166
      %p177 = scmp.eq.s32.totalorder %s26, 0
      %p178 = por %p176, %p177
      %p179 = scmp.ne.s32.totalorder %s165, %s166
      %p180 = scmp.eq.s32.totalorder %s27, 1
      %p181 = por %p179, %p180
      %p183 = scmp.ne.s32.totalorder %s166, %s182
      %p184 = scmp.eq.s32.totalorder %s27, 0
      %p185 = por %p183, %p184
      %p186 = scmp.le.s32.totalorder 1, %s21
      %p187 = scmp.lt.s32.totalorder %s21, 3
      %p188 = pnand %p186, %p187
      %p189 = pneg %p188
      // Predicated region
      $region9: #{tpu_custom_call.1} parent=5 // pred_check
        _
      $region10: #{tpu_custom_call.1} parent=5 // pred_check_branch
        %191 = sbr.rel (%p188) target = $region12
      $region11: #{tpu_custom_call.1} parent=5 // pred_region
        %s192 = ssub.s32 %s21, 1
        // Predicated region
        $region13: #{tpu_custom_call.1} parent=11 // pred_check
          %p193 = pneg %p68
        $region14: #{tpu_custom_call.1} parent=11 // pred_check_branch
          %195 = sbr.rel (%p193) target = $region16
        $region15: #{tpu_custom_call.1} parent=11 // pred_region
          %s197 = ssub.s32 256, 256
          %198 = vsyncadd [#allocation7], %s197
          %s199 = sshll.u32 [#allocation6], 4
          %s200 = int_to_ptr.vmem [resolvable:$true] %s199
          %205 = dma.hbm_to_vmem [thread:$0]  %s1, 256, %s200, [#allocation7], 64, 64, 4
        $region16: #{tpu_custom_call.1} parent=11 // pred_fallthru
          _
        // Predicated region
        $region17: #{tpu_custom_call.1} parent=11 // pred_check
          %p206 = pneg %p89
        $region18: #{tpu_custom_call.1} parent=11 // pred_check_branch
          %208 = sbr.rel (%p206) target = $region20
        $region19: #{tpu_custom_call.1} parent=11 // pred_region
          %s210 = ssub.s32 16, 16
          %211 = vsyncadd [#allocation7], %s210
          %s213 = sshll.u32 [#allocation8], 4
          %s214 = int_to_ptr.vmem [resolvable:$true] %s213
          %216 = dma.hbm_to_vmem [thread:$0]  %s2, 16, %s214, [#allocation7]
        $region20: #{tpu_custom_call.1} parent=11 // pred_fallthru
          _
        // Predicated region
        $region21: #{tpu_custom_call.1} parent=11 // pred_check
          %p217 = pneg %p110
        $region22: #{tpu_custom_call.1} parent=11 // pred_check_branch
          %219 = sbr.rel (%p217) target = $region24
        $region23: #{tpu_custom_call.1} parent=11 // pred_region
          %s221 = ssub.s32 256, 256
          %222 = vsyncadd [#allocation10], %s221
          %s223 = sshll.u32 [#allocation9], 4
          %s224 = int_to_ptr.vmem [resolvable:$true] %s223
          %229 = dma.hbm_to_vmem [thread:$0]  %s3, 256, %s224, [#allocation10], 64, 64, 4
        $region24: #{tpu_custom_call.1} parent=11 // pred_fallthru
          _
        // Predicated region
        $region25: #{tpu_custom_call.1} parent=11 // pred_check
          %p230 = pneg %p131
        $region26: #{tpu_custom_call.1} parent=11 // pred_check_branch
          %232 = sbr.rel (%p230) target = $region28
        $region27: #{tpu_custom_call.1} parent=11 // pred_region
          %s234 = ssub.s32 16, 16
          %235 = vsyncadd [#allocation10], %s234
          %s237 = sshll.u32 [#allocation11], 4
          %s238 = int_to_ptr.vmem [resolvable:$true] %s237
          %240 = dma.hbm_to_vmem [thread:$0]  %s4, 16, %s238, [#allocation10]
        $region28: #{tpu_custom_call.1} parent=11 // pred_fallthru
          _
        // Predicated region
        $region29: #{tpu_custom_call.1} parent=11 // pred_check
          %p241 = pneg %p152
        $region30: #{tpu_custom_call.1} parent=11 // pred_check_branch
          %243 = sbr.rel (%p241) target = $region32
        $region31: #{tpu_custom_call.1} parent=11 // pred_region
          %s245 = ssub.s32 128, 128
          %246 = vsyncadd [#allocation13], %s245
          %s248 = sshll.u32 [#allocation12], 4
          %s249 = int_to_ptr.vmem [resolvable:$true] %s248
          %251 = dma.hbm_to_vmem [thread:$0]  %s5, 128, %s249, [#allocation13]
        $region32: #{tpu_custom_call.1} parent=11 // pred_fallthru
          _
      $region12: #{tpu_custom_call.1} parent=5 // pred_fallthru
        _
      %p252 = scmp.lt.s32.totalorder %s21, 2
      // Predicated region
      $region33: #{tpu_custom_call.1} parent=5 // pred_check
        %p253 = pneg %p252
      $region34: #{tpu_custom_call.1} parent=5 // pred_check_branch
        %255 = sbr.rel (%p253) target = $region36
      $region35: #{tpu_custom_call.1} parent=5 // pred_region
        // Predicated region
        $region37: #{tpu_custom_call.1} parent=35 // pred_check
          %p256 = pneg %p41
        $region38: #{tpu_custom_call.1} parent=35 // pred_check_branch
          %258 = sbr.rel (%p256) target = $region40
        $region39: #{tpu_custom_call.1} parent=35 // pred_region
          %s259 = sand.u32 %s31, 1
          %s260 = scalar_lea.sflag [#allocation4], %s259
          %s261 = sand.u32 %s31, 1
          %s262 = smul.addr %s261, 4
          %s263 = scalar_lea.vmem [#allocation3], %s262
          %s265 = ssub.s32 64, 64
          %266 = vsyncadd %s260, %s265
          %s267 = smul.addr %s21, 64
          %s268 = scalar_lea.hbm %s0, %s267
          %s270 = sshll.u32 %s263, 4
          %s271 = int_to_ptr.vmem [resolvable:$true] %s270
          %273 = dma.hbm_to_vmem [thread:$0]  %s268, 64, %s271, %s260
        $region40: #{tpu_custom_call.1} parent=35 // pred_fallthru
          _
      $region36: #{tpu_custom_call.1} parent=5 // pred_fallthru
        _
      %p274 = scmp.le.s32.totalorder 1, %s21
      %p275 = scmp.lt.s32.totalorder %s21, 3
      %p276 = pnand %p274, %p275
      %p277 = pneg %p276
      // Predicated region
      $region41: #{tpu_custom_call.1} parent=5 // pred_check
        _
      $region42: #{tpu_custom_call.1} parent=5 // pred_check_branch
        %279 = sbr.rel (%p276) target = $region44
      $region43: #{tpu_custom_call.1} parent=5 // pred_region
        %s280 = ssub.s32 %s21, 1
        %s281 = sand.u32 %s34, 1
        %s282 = scalar_lea.sflag [#allocation4], %s281
        %s283 = sand.u32 %s34, 1
        %s284 = smul.addr %s283, 4
        %s285 = scalar_lea.vmem [#allocation3], %s284
        // Predicated region
        $region45: #{tpu_custom_call.1} parent=43 // pred_check
          %p286 = pneg %p47
        $region46: #{tpu_custom_call.1} parent=43 // pred_check_branch
          %288 = sbr.rel (%p286) target = $region48
        $region47: #{tpu_custom_call.1} parent=43 // pred_region
          %289 = dma.done %s282, 64
        $region48: #{tpu_custom_call.1} parent=43 // pred_fallthru
          _
        // Predicated region
        $region49: #{tpu_custom_call.1} parent=43 // pred_check
          %p290 = pneg %p68
        $region50: #{tpu_custom_call.1} parent=43 // pred_check_branch
          %292 = sbr.rel (%p290) target = $region52
        $region51: #{tpu_custom_call.1} parent=43 // pred_region
          %293 = dma.done [#allocation7], 256
        $region52: #{tpu_custom_call.1} parent=43 // pred_fallthru
          _
        // Predicated region
        $region53: #{tpu_custom_call.1} parent=43 // pred_check
          %p294 = pneg %p89
        $region54: #{tpu_custom_call.1} parent=43 // pred_check_branch
          %296 = sbr.rel (%p294) target = $region56
        $region55: #{tpu_custom_call.1} parent=43 // pred_region
          %297 = dma.done [#allocation7], 16
        $region56: #{tpu_custom_call.1} parent=43 // pred_fallthru
          _
        // Predicated region
        $region57: #{tpu_custom_call.1} parent=43 // pred_check
          %p298 = pneg %p110
        $region58: #{tpu_custom_call.1} parent=43 // pred_check_branch
          %300 = sbr.rel (%p298) target = $region60
        $region59: #{tpu_custom_call.1} parent=43 // pred_region
          %301 = dma.done [#allocation10], 256
        $region60: #{tpu_custom_call.1} parent=43 // pred_fallthru
          _
        // Predicated region
        $region61: #{tpu_custom_call.1} parent=43 // pred_check
          %p302 = pneg %p131
        $region62: #{tpu_custom_call.1} parent=43 // pred_check_branch
          %304 = sbr.rel (%p302) target = $region64
        $region63: #{tpu_custom_call.1} parent=43 // pred_region
          %305 = dma.done [#allocation10], 16
        $region64: #{tpu_custom_call.1} parent=43 // pred_fallthru
          _
        // Predicated region
        $region65: #{tpu_custom_call.1} parent=43 // pred_check
          %p306 = pneg %p152
        $region66: #{tpu_custom_call.1} parent=43 // pred_check_branch
          %308 = sbr.rel (%p306) target = $region68
        $region67: #{tpu_custom_call.1} parent=43 // pred_region
          %309 = dma.done [#allocation13], 128
        $region68: #{tpu_custom_call.1} parent=43 // pred_fallthru
          _
        %s310 = sand.u32 %s34, 1
        %s311 = scalar_lea.sflag [#allocation4], %s310
        %s312 = sand.u32 %s34, 1
        %s313 = smul.addr %s312, 4
        %s314 = scalar_lea.vmem [#allocation3], %s313
        %p315 = pneg %p47
        %p316 = pneg %p44
        %p317 = pneg %p68
        %p318 = pneg %p65
        %p319 = pneg %p89
        %p320 = pneg %p86
        %p321 = pneg %p110
        %p322 = pneg %p107
        %p323 = pneg %p131
        %p324 = pneg %p128
        %p325 = pneg %p152
        %p326 = pneg %p149
        %p327 = pneg %p178
        %p328 = pneg %p175
        %s329 = sand.u32 %s165, 1
        %s330 = scalar_lea.sflag [#allocation5], %s329
        %s331 = sand.u32 %s165, 1
        %s332 = smul.addr %s331, 8
        %s333 = scalar_lea.vmem [#allocation14], %s332
        %v335 = vld [vmem:[%s285] sm:$0xf]
        %v336 = vld [vmem:[#allocation6] sm:$0xf]
        %v337 = vld [vmem:[#allocation6 + $0x4] sm:$0xf]
        %v338 = vld [vmem:[#allocation6 + $0x8] sm:$0xf]
        %v339 = vld [vmem:[#allocation6 + $0xc] sm:$0xf]
        %v340 = vld [vmem:[#allocation8] sm:$0x1]
        %v342 = vlaneseq
        %v343 = vshrl.u32 %v342, 7
        %v344 = vsub.s32 0, %v343
        %v345 = vrot.slane %v340, %v344
        %v351 = vunpack.c.l.b16 %v336
        %v352 = vunpack.c.l.b16 %v337
        %v353 = vunpack.c.l.b16 %v338
        %v354 = vunpack.c.l.b16 %v339
        %v355 = vpack.c.b16 %v352, %v351
        %v356 = vpack.c.b16 %v354, %v353
        %vm359 = vcmask 261120
        %v361 = vsel %vm359, %v335, 0
        %363 = vmatprep.subr.bf16.mxu0 0
        %364 = vmatpush1.bf16.msra.mxu0 %v355
        %365 = vmatprep.subr.bf16.mxu0 0
        %366 = vmatpush1.bf16.msra.mxu0 %v356
        %367 = vmatprep.subr.bf16.mxu0 0
        %368 = vmatpush1.bf16.msra.mxu0 0
        %369 = vmatprep.subr.bf16.mxu0 0
        %370 = vmatpush1.bf16.msra.mxu0 0
        %371 = vmatprep.subr.bf16.mxu0 0
        %372 = vmatpush1.bf16.msra.mxu0 0
        %373 = vmatprep.subr.bf16.mxu0 0
        %374 = vmatpush1.bf16.msra.mxu0 0
        %375 = vmatprep.subr.bf16.mxu0 0
        %376 = vmatpush1.bf16.msra.mxu0 0
        %377 = vmatprep.subr.bf16.mxu0 0
        %378 = vmatpush1.bf16.msra.mxu0 0
        %379 = vmatprep.subr.bf16.mxu0 0
        %380 = vmatpush1.bf16.msra.mxu0 0
        %381 = vmatprep.subr.bf16.mxu0 0
        %382 = vmatpush1.bf16.msra.mxu0 0
        %383 = vmatprep.subr.bf16.mxu0 0
        %384 = vmatpush1.bf16.msra.mxu0 0
        %385 = vmatprep.subr.bf16.mxu0 0
        %386 = vmatpush1.bf16.msra.mxu0 0
        %387 = vmatprep.subr.bf16.mxu0 0
        %388 = vmatpush1.bf16.msra.mxu0 0
        %389 = vmatprep.subr.bf16.mxu0 0
        %390 = vmatpush1.bf16.msra.mxu0 0
        %391 = vmatprep.subr.bf16.mxu0 0
        %392 = vmatpush1.bf16.msra.mxu0 0
        %393 = vmatprep.subr.bf16.mxu0 0
        %394 = vmatpush1.bf16.msra.mxu0 0
        %395 = vmatprep.mubr.bf16.mxu0 0
        %396 = vmatmul.mubr.bf16.gmra.mrb[0].mxu0 %v361
        %v397 = vpop.f32.mrb[0].mxu0
        %v398 = vadd.f32 %v345, %v397
        %v399 = vpop.f32.mrb[0].mxu0
        %v400 = vpop.f32.mrb[0].mxu0
        %v401 = vpop.f32.mrb[0].mxu0
        %402 = vdwg.mxu0
        %v403 = vmul.f32 %v398, 0.35355338
        %405 = vrot.lane.b32.xlu0 %v403, 120
        %v406 = vpop.permute.xlu0 %405
        %408 = vrot.lane.b32.xlu0 %v403, 112
        %v409 = vpop.permute.xlu0 %408
        %411 = vrot.lane.b32.xlu0 %v403, 104
        %v412 = vpop.permute.xlu0 %411
        %v414 = vpack.c.bf16 %v403, %v403
        %v415 = vpack.c.bf16 %v406, %v406
        %v416 = vpack.c.bf16 %v409, %v409
        %v417 = vpack.c.bf16 %v412, %v412
        %419 = vrot.lane.b32.xlu0 %v398, 120
        %v420 = vpop.permute.xlu0 %419
        %422 = vrot.lane.b32.xlu0 %v398, 112
        %v423 = vpop.permute.xlu0 %422
        %425 = vrot.lane.b32.xlu0 %v398, 104
        %v426 = vpop.permute.xlu0 %425
        %v428 = vpack.c.bf16 %v398, %v398
        %v429 = vpack.c.bf16 %v420, %v420
        %v430 = vpack.c.bf16 %v423, %v423
        %v431 = vpack.c.bf16 %v426, %v426
        %v432 = vld [vmem:[#allocation12] sm:$0xff]
        %434 = vrot.lane.b32.xlu0 %v428, 96
        %v435 = vpop.permute.xlu0 %434
        %vm436 = vcmask 64512
        %v438 = vsel %vm436, %v414, 0
        %v441 = vsel %vm436, %v435, 0
        %443 = vmatprep.subr.bf16.mxu0 0
        %444 = vmatpush1.bf16.xpose.msra.mxu0 %v441
        %445 = vmatprep.subr.bf16.mxu0 0
        %446 = vmatpush1.bf16.xpose.msra.mxu0 0
        %447 = vmatprep.subr.bf16.mxu0 0
        %448 = vmatpush1.bf16.xpose.msra.mxu0 0
        %449 = vmatprep.subr.bf16.mxu0 0
        %450 = vmatpush1.bf16.xpose.msra.mxu0 0
        %451 = vmatprep.subr.bf16.mxu0 0
        %452 = vmatpush1.bf16.xpose.msra.mxu0 0
        %453 = vmatprep.subr.bf16.mxu0 0
        %454 = vmatpush1.bf16.xpose.msra.mxu0 0
        %455 = vmatprep.subr.bf16.mxu0 0
        %456 = vmatpush1.bf16.xpose.msra.mxu0 0
        %457 = vmatprep.subr.bf16.mxu0 0
        %458 = vmatpush1.bf16.xpose.msra.mxu0 0
        %459 = vmatprep.subr.bf16.mxu0 0
        %460 = vmatpush1.bf16.xpose.msra.mxu0 0
        %461 = vmatprep.subr.bf16.mxu0 0
        %462 = vmatpush1.bf16.xpose.msra.mxu0 0
        %463 = vmatprep.subr.bf16.mxu0 0
        %464 = vmatpush1.bf16.xpose.msra.mxu0 0
        %465 = vmatprep.subr.bf16.mxu0 0
        %466 = vmatpush1.bf16.xpose.msra.mxu0 0
        %467 = vmatprep.subr.bf16.mxu0 0
        %468 = vmatpush1.bf16.xpose.msra.mxu0 0
        %469 = vmatprep.subr.bf16.mxu0 0
        %470 = vmatpush1.bf16.xpose.msra.mxu0 0
        %471 = vmatprep.subr.bf16.mxu0 0
        %472 = vmatpush1.bf16.xpose.msra.mxu0 0
        %473 = vmatprep.subr.bf16.mxu0 0
        %474 = vmatpush1.bf16.xpose.msra.mxu0 0
        %475 = vmatprep.mubr.bf16.mxu0 0
        %476 = vmatmul.mubr.bf16.gmra.mrb[0].mxu0 %v438
        %v477 = vpop.f32.mrb[0].mxu0
        %v478 = vadd.f32 %v432, %v477
        %v479 = vpop.f32.mrb[0].mxu0
        %v480 = vpop.f32.mrb[0].mxu0
        %v481 = vpop.f32.mrb[0].mxu0
        %482 = vdwg.mxu0
        %484 = vrot.lane.b32.xlu0 %v429, 96
        %v485 = vpop.permute.xlu0 %484
        %v487 = vsel %vm436, %v415, 0
        %v490 = vsel %vm436, %v485, 0
        %492 = vmatprep.subr.bf16.mxu0 0
        %493 = vmatpush1.bf16.xpose.msra.mxu0 %v490
        %494 = vmatprep.subr.bf16.mxu0 0
        %495 = vmatpush1.bf16.xpose.msra.mxu0 0
        %496 = vmatprep.subr.bf16.mxu0 0
        %497 = vmatpush1.bf16.xpose.msra.mxu0 0
        %498 = vmatprep.subr.bf16.mxu0 0
        %499 = vmatpush1.bf16.xpose.msra.mxu0 0
        %500 = vmatprep.subr.bf16.mxu0 0
        %501 = vmatpush1.bf16.xpose.msra.mxu0 0
        %502 = vmatprep.subr.bf16.mxu0 0
        %503 = vmatpush1.bf16.xpose.msra.mxu0 0
        %504 = vmatprep.subr.bf16.mxu0 0
        %505 = vmatpush1.bf16.xpose.msra.mxu0 0
        %506 = vmatprep.subr.bf16.mxu0 0
        %507 = vmatpush1.bf16.xpose.msra.mxu0 0
        %508 = vmatprep.subr.bf16.mxu0 0
        %509 = vmatpush1.bf16.xpose.msra.mxu0 0
        %510 = vmatprep.subr.bf16.mxu0 0
        %511 = vmatpush1.bf16.xpose.msra.mxu0 0
        %512 = vmatprep.subr.bf16.mxu0 0
        %513 = vmatpush1.bf16.xpose.msra.mxu0 0
        %514 = vmatprep.subr.bf16.mxu0 0
        %515 = vmatpush1.bf16.xpose.msra.mxu0 0
        %516 = vmatprep.subr.bf16.mxu0 0
        %517 = vmatpush1.bf16.xpose.msra.mxu0 0
        %518 = vmatprep.subr.bf16.mxu0 0
        %519 = vmatpush1.bf16.xpose.msra.mxu0 0
        %520 = vmatprep.subr.bf16.mxu0 0
        %521 = vmatpush1.bf16.xpose.msra.mxu0 0
        %522 = vmatprep.subr.bf16.mxu0 0
        %523 = vmatpush1.bf16.xpose.msra.mxu0 0
        %524 = vmatprep.mubr.bf16.mxu0 0
        %525 = vmatmul.mubr.bf16.gmra.mrb[0].mxu0 %v487
        %v526 = vpop.f32.mrb[0].mxu0
        %v527 = vadd.f32 %v432, %v526
        %v528 = vpop.f32.mrb[0].mxu0
        %v529 = vpop.f32.mrb[0].mxu0
        %v530 = vpop.f32.mrb[0].mxu0
        %531 = vdwg.mxu0
        %533 = vrot.lane.b32.xlu0 %v430, 96
        %v534 = vpop.permute.xlu0 %533
        %v536 = vsel %vm436, %v416, 0
        %v539 = vsel %vm436, %v534, 0
        %541 = vmatprep.subr.bf16.mxu0 0
        %542 = vmatpush1.bf16.xpose.msra.mxu0 %v539
        %543 = vmatprep.subr.bf16.mxu0 0
        %544 = vmatpush1.bf16.xpose.msra.mxu0 0
        %545 = vmatprep.subr.bf16.mxu0 0
        %546 = vmatpush1.bf16.xpose.msra.mxu0 0
        %547 = vmatprep.subr.bf16.mxu0 0
        %548 = vmatpush1.bf16.xpose.msra.mxu0 0
        %549 = vmatprep.subr.bf16.mxu0 0
        %550 = vmatpush1.bf16.xpose.msra.mxu0 0
        %551 = vmatprep.subr.bf16.mxu0 0
        %552 = vmatpush1.bf16.xpose.msra.mxu0 0
        %553 = vmatprep.subr.bf16.mxu0 0
        %554 = vmatpush1.bf16.xpose.msra.mxu0 0
        %555 = vmatprep.subr.bf16.mxu0 0
        %556 = vmatpush1.bf16.xpose.msra.mxu0 0
        %557 = vmatprep.subr.bf16.mxu0 0
        %558 = vmatpush1.bf16.xpose.msra.mxu0 0
        %559 = vmatprep.subr.bf16.mxu0 0
        %560 = vmatpush1.bf16.xpose.msra.mxu0 0
        %561 = vmatprep.subr.bf16.mxu0 0
        %562 = vmatpush1.bf16.xpose.msra.mxu0 0
        %563 = vmatprep.subr.bf16.mxu0 0
        %564 = vmatpush1.bf16.xpose.msra.mxu0 0
        %565 = vmatprep.subr.bf16.mxu0 0
        %566 = vmatpush1.bf16.xpose.msra.mxu0 0
        %567 = vmatprep.subr.bf16.mxu0 0
        %568 = vmatpush1.bf16.xpose.msra.mxu0 0
        %569 = vmatprep.subr.bf16.mxu0 0
        %570 = vmatpush1.bf16.xpose.msra.mxu0 0
        %571 = vmatprep.subr.bf16.mxu0 0
        %572 = vmatpush1.bf16.xpose.msra.mxu0 0
        %573 = vmatprep.mubr.bf16.mxu0 0
        %574 = vmatmul.mubr.bf16.gmra.mrb[0].mxu0 %v536
        %v575 = vpop.f32.mrb[0].mxu0
        %v576 = vadd.f32 %v432, %v575
        %v577 = vpop.f32.mrb[0].mxu0
        %v578 = vpop.f32.mrb[0].mxu0
        %v579 = vpop.f32.mrb[0].mxu0
        %580 = vdwg.mxu0
        %582 = vrot.lane.b32.xlu0 %v431, 96
        %v583 = vpop.permute.xlu0 %582
        %v585 = vsel %vm436, %v417, 0
        %v588 = vsel %vm436, %v583, 0
        %590 = vmatprep.subr.bf16.mxu0 0
        %591 = vmatpush1.bf16.xpose.msra.mxu0 %v588
        %592 = vmatprep.subr.bf16.mxu0 0
        %593 = vmatpush1.bf16.xpose.msra.mxu0 0
        %594 = vmatprep.subr.bf16.mxu0 0
        %595 = vmatpush1.bf16.xpose.msra.mxu0 0
        %596 = vmatprep.subr.bf16.mxu0 0
        %597 = vmatpush1.bf16.xpose.msra.mxu0 0
        %598 = vmatprep.subr.bf16.mxu0 0
        %599 = vmatpush1.bf16.xpose.msra.mxu0 0
        %600 = vmatprep.subr.bf16.mxu0 0
        %601 = vmatpush1.bf16.xpose.msra.mxu0 0
        %602 = vmatprep.subr.bf16.mxu0 0
        %603 = vmatpush1.bf16.xpose.msra.mxu0 0
        %604 = vmatprep.subr.bf16.mxu0 0
        %605 = vmatpush1.bf16.xpose.msra.mxu0 0
        %606 = vmatprep.subr.bf16.mxu0 0
        %607 = vmatpush1.bf16.xpose.msra.mxu0 0
        %608 = vmatprep.subr.bf16.mxu0 0
        %609 = vmatpush1.bf16.xpose.msra.mxu0 0
        %610 = vmatprep.subr.bf16.mxu0 0
        %611 = vmatpush1.bf16.xpose.msra.mxu0 0
        %612 = vmatprep.subr.bf16.mxu0 0
        %613 = vmatpush1.bf16.xpose.msra.mxu0 0
        %614 = vmatprep.subr.bf16.mxu0 0
        %615 = vmatpush1.bf16.xpose.msra.mxu0 0
        %616 = vmatprep.subr.bf16.mxu0 0
        %617 = vmatpush1.bf16.xpose.msra.mxu0 0
        %618 = vmatprep.subr.bf16.mxu0 0
        %619 = vmatpush1.bf16.xpose.msra.mxu0 0
        %620 = vmatprep.subr.bf16.mxu0 0
        %621 = vmatpush1.bf16.xpose.msra.mxu0 0
        %622 = vmatprep.mubr.bf16.mxu0 0
        %623 = vmatmul.mubr.bf16.gmra.mrb[0].mxu0 %v585
        %v624 = vpop.f32.mrb[0].mxu0
        %v625 = vadd.f32 %v432, %v624
        %v626 = vpop.f32.mrb[0].mxu0
        %v627 = vpop.f32.mrb[0].mxu0
        %v628 = vpop.f32.mrb[0].mxu0
        %629 = vdwg.mxu0
        %v630 = vsel %vm436, %v478, -inf
        %631 = vmax.xlane.f32.xlu0 %v630
        %v632 = vpop.xlane.xlu0 %631
        %v633 = vsel %vm436, %v527, -inf
        %634 = vmax.xlane.f32.xlu0 %v633
        %v635 = vpop.xlane.xlu0 %634
        %v636 = vsel %vm436, %v576, -inf
        %637 = vmax.xlane.f32.xlu0 %v636
        %v638 = vpop.xlane.xlu0 %637
        %v639 = vsel %vm436, %v625, -inf
        %640 = vmax.xlane.f32.xlu0 %v639
        %v641 = vpop.xlane.xlu0 %640
        %v642 = vsub.f32 %v478, %v632
        %v643 = vsub.f32 %v527, %v635
        %v644 = vsub.f32 %v576, %v638
        %v645 = vsub.f32 %v625, %v641
        %v646 = vmul.f32 %v642, 1.442695
        %v647 = vpow.pop %v646
        %v648 = vmul.f32 %v643, 1.442695
        %v649 = vpow.pop %v648
        %v650 = vmul.f32 %v644, 1.442695
        %v651 = vpow.pop %v650
        %v652 = vmul.f32 %v645, 1.442695
        %v653 = vpow.pop %v652
        %v654 = vsel %vm436, %v647, 0.0
        %655 = vadd.xlane.f32.xlu0 %v654
        %v656 = vpop.xlane.xlu0 %655
        %v657 = vsel %vm436, %v649, 0.0
        %658 = vadd.xlane.f32.xlu0 %v657
        %v659 = vpop.xlane.xlu0 %658
        %v660 = vsel %vm436, %v651, 0.0
        %661 = vadd.xlane.f32.xlu0 %v660
        %v662 = vpop.xlane.xlu0 %661
        %v663 = vsel %vm436, %v653, 0.0
        %664 = vadd.xlane.f32.xlu0 %v663
        %v665 = vpop.xlane.xlu0 %664
        %v666 = vrcp.pop %v656
        %v667 = vrcp.pop %v659
        %v668 = vrcp.pop %v662
        %v669 = vrcp.pop %v665
        %v670 = vmul.f32 %v647, %v666
        %v671 = vmul.f32 %v649, %v667
        %v672 = vmul.f32 %v651, %v668
        %v673 = vmul.f32 %v653, %v669
        %v674 = vpack.c.bf16 %v670, %v670
        %v675 = vpack.c.bf16 %v671, %v671
        %v676 = vpack.c.bf16 %v672, %v672
        %v677 = vpack.c.bf16 %v673, %v673
        %678 = vrot.lane.b32.xlu0 %v428, 64
        %v679 = vpop.permute.xlu0 %678
        %v681 = vsel %vm436, %v674, 0
        %vm683 = vcmask 1043456
        %v685 = vsel %vm683, %v679, 0
        %687 = vmatprep.subr.bf16.mxu0 0
        %688 = vmatpush1.bf16.msra.mxu0 %v685
        %689 = vmatprep.subr.bf16.mxu0 0
        %690 = vmatpush1.bf16.msra.mxu0 0
        %691 = vmatprep.subr.bf16.mxu0 0
        %692 = vmatpush1.bf16.msra.mxu0 0
        %693 = vmatprep.subr.bf16.mxu0 0
        %694 = vmatpush1.bf16.msra.mxu0 0
        %695 = vmatprep.subr.bf16.mxu0 0
        %696 = vmatpush1.bf16.msra.mxu0 0
        %697 = vmatprep.subr.bf16.mxu0 0
        %698 = vmatpush1.bf16.msra.mxu0 0
        %699 = vmatprep.subr.bf16.mxu0 0
        %700 = vmatpush1.bf16.msra.mxu0 0
        %701 = vmatprep.subr.bf16.mxu0 0
        %702 = vmatpush1.bf16.msra.mxu0 0
        %703 = vmatprep.subr.bf16.mxu0 0
        %704 = vmatpush1.bf16.msra.mxu0 0
        %705 = vmatprep.subr.bf16.mxu0 0
        %706 = vmatpush1.bf16.msra.mxu0 0
        %707 = vmatprep.subr.bf16.mxu0 0
        %708 = vmatpush1.bf16.msra.mxu0 0
        %709 = vmatprep.subr.bf16.mxu0 0
        %710 = vmatpush1.bf16.msra.mxu0 0
        %711 = vmatprep.subr.bf16.mxu0 0
        %712 = vmatpush1.bf16.msra.mxu0 0
        %713 = vmatprep.subr.bf16.mxu0 0
        %714 = vmatpush1.bf16.msra.mxu0 0
        %715 = vmatprep.subr.bf16.mxu0 0
        %716 = vmatpush1.bf16.msra.mxu0 0
        %717 = vmatprep.subr.bf16.mxu0 0
        %718 = vmatpush1.bf16.msra.mxu0 0
        %719 = vmatprep.mubr.bf16.mxu0 0
        %720 = vmatmul.mubr.bf16.gmra.mrb[0].mxu0 %v681
        %v721 = vpop.f32.mrb[0].mxu0
        %v722 = vadd.f32 0.0, %v721
        %v723 = vpop.f32.mrb[0].mxu0
        %v724 = vpop.f32.mrb[0].mxu0
        %v725 = vpop.f32.mrb[0].mxu0
        %726 = vdwg.mxu0
        %727 = vrot.lane.b32.xlu0 %v429, 64
        %v728 = vpop.permute.xlu0 %727
        %v730 = vsel %vm436, %v675, 0
        %v733 = vsel %vm683, %v728, 0
        %735 = vmatprep.subr.bf16.mxu0 0
        %736 = vmatpush1.bf16.msra.mxu0 %v733
        %737 = vmatprep.subr.bf16.mxu0 0
        %738 = vmatpush1.bf16.msra.mxu0 0
        %739 = vmatprep.subr.bf16.mxu0 0
        %740 = vmatpush1.bf16.msra.mxu0 0
        %741 = vmatprep.subr.bf16.mxu0 0
        %742 = vmatpush1.bf16.msra.mxu0 0
        %743 = vmatprep.subr.bf16.mxu0 0
        %744 = vmatpush1.bf16.msra.mxu0 0
        %745 = vmatprep.subr.bf16.mxu0 0
        %746 = vmatpush1.bf16.msra.mxu0 0
        %747 = vmatprep.subr.bf16.mxu0 0
        %748 = vmatpush1.bf16.msra.mxu0 0
        %749 = vmatprep.subr.bf16.mxu0 0
        %750 = vmatpush1.bf16.msra.mxu0 0
        %751 = vmatprep.subr.bf16.mxu0 0
        %752 = vmatpush1.bf16.msra.mxu0 0
        %753 = vmatprep.subr.bf16.mxu0 0
        %754 = vmatpush1.bf16.msra.mxu0 0
        %755 = vmatprep.subr.bf16.mxu0 0
        %756 = vmatpush1.bf16.msra.mxu0 0
        %757 = vmatprep.subr.bf16.mxu0 0
        %758 = vmatpush1.bf16.msra.mxu0 0
        %759 = vmatprep.subr.bf16.mxu0 0
        %760 = vmatpush1.bf16.msra.mxu0 0
        %761 = vmatprep.subr.bf16.mxu0 0
        %762 = vmatpush1.bf16.msra.mxu0 0
        %763 = vmatprep.subr.bf16.mxu0 0
        %764 = vmatpush1.bf16.msra.mxu0 0
        %765 = vmatprep.subr.bf16.mxu0 0
        %766 = vmatpush1.bf16.msra.mxu0 0
        %767 = vmatprep.mubr.bf16.mxu0 0
        %768 = vmatmul.mubr.bf16.gmra.mrb[0].mxu0 %v730
        %v769 = vpop.f32.mrb[0].mxu0
        %v770 = vadd.f32 0.0, %v769
        %v771 = vpop.f32.mrb[0].mxu0
        %v772 = vpop.f32.mrb[0].mxu0
        %v773 = vpop.f32.mrb[0].mxu0
        %774 = vdwg.mxu0
        %775 = vrot.lane.b32.xlu0 %v430, 64
        %v776 = vpop.permute.xlu0 %775
        %v778 = vsel %vm436, %v676, 0
        %v781 = vsel %vm683, %v776, 0
        %783 = vmatprep.subr.bf16.mxu0 0
        %784 = vmatpush1.bf16.msra.mxu0 %v781
        %785 = vmatprep.subr.bf16.mxu0 0
        %786 = vmatpush1.bf16.msra.mxu0 0
        %787 = vmatprep.subr.bf16.mxu0 0
        %788 = vmatpush1.bf16.msra.mxu0 0
        %789 = vmatprep.subr.bf16.mxu0 0
        %790 = vmatpush1.bf16.msra.mxu0 0
        %791 = vmatprep.subr.bf16.mxu0 0
        %792 = vmatpush1.bf16.msra.mxu0 0
        %793 = vmatprep.subr.bf16.mxu0 0
        %794 = vmatpush1.bf16.msra.mxu0 0
        %795 = vmatprep.subr.bf16.mxu0 0
        %796 = vmatpush1.bf16.msra.mxu0 0
        %797 = vmatprep.subr.bf16.mxu0 0
        %798 = vmatpush1.bf16.msra.mxu0 0
        %799 = vmatprep.subr.bf16.mxu0 0
        %800 = vmatpush1.bf16.msra.mxu0 0
        %801 = vmatprep.subr.bf16.mxu0 0
        %802 = vmatpush1.bf16.msra.mxu0 0
        %803 = vmatprep.subr.bf16.mxu0 0
        %804 = vmatpush1.bf16.msra.mxu0 0
        %805 = vmatprep.subr.bf16.mxu0 0
        %806 = vmatpush1.bf16.msra.mxu0 0
        %807 = vmatprep.subr.bf16.mxu0 0
        %808 = vmatpush1.bf16.msra.mxu0 0
        %809 = vmatprep.subr.bf16.mxu0 0
        %810 = vmatpush1.bf16.msra.mxu0 0
        %811 = vmatprep.subr.bf16.mxu0 0
        %812 = vmatpush1.bf16.msra.mxu0 0
        %813 = vmatprep.subr.bf16.mxu0 0
        %814 = vmatpush1.bf16.msra.mxu0 0
        %815 = vmatprep.mubr.bf16.mxu0 0
        %816 = vmatmul.mubr.bf16.gmra.mrb[0].mxu0 %v778
        %v817 = vpop.f32.mrb[0].mxu0
        %v818 = vadd.f32 0.0, %v817
        %v819 = vpop.f32.mrb[0].mxu0
        %v820 = vpop.f32.mrb[0].mxu0
        %v821 = vpop.f32.mrb[0].mxu0
        %822 = vdwg.mxu0
        %823 = vrot.lane.b32.xlu0 %v431, 64
        %v824 = vpop.permute.xlu0 %823
        %v826 = vsel %vm436, %v677, 0
        %v829 = vsel %vm683, %v824, 0
        %831 = vmatprep.subr.bf16.mxu0 0
        %832 = vmatpush1.bf16.msra.mxu0 %v829
        %833 = vmatprep.subr.bf16.mxu0 0
        %834 = vmatpush1.bf16.msra.mxu0 0
        %835 = vmatprep.subr.bf16.mxu0 0
        %836 = vmatpush1.bf16.msra.mxu0 0
        %837 = vmatprep.subr.bf16.mxu0 0
        %838 = vmatpush1.bf16.msra.mxu0 0
        %839 = vmatprep.subr.bf16.mxu0 0
        %840 = vmatpush1.bf16.msra.mxu0 0
        %841 = vmatprep.subr.bf16.mxu0 0
        %842 = vmatpush1.bf16.msra.mxu0 0
        %843 = vmatprep.subr.bf16.mxu0 0
        %844 = vmatpush1.bf16.msra.mxu0 0
        %845 = vmatprep.subr.bf16.mxu0 0
        %846 = vmatpush1.bf16.msra.mxu0 0
        %847 = vmatprep.subr.bf16.mxu0 0
        %848 = vmatpush1.bf16.msra.mxu0 0
        %849 = vmatprep.subr.bf16.mxu0 0
        %850 = vmatpush1.bf16.msra.mxu0 0
        %851 = vmatprep.subr.bf16.mxu0 0
        %852 = vmatpush1.bf16.msra.mxu0 0
        %853 = vmatprep.subr.bf16.mxu0 0
        %854 = vmatpush1.bf16.msra.mxu0 0
        %855 = vmatprep.subr.bf16.mxu0 0
        %856 = vmatpush1.bf16.msra.mxu0 0
        %857 = vmatprep.subr.bf16.mxu0 0
        %858 = vmatpush1.bf16.msra.mxu0 0
        %859 = vmatprep.subr.bf16.mxu0 0
        %860 = vmatpush1.bf16.msra.mxu0 0
        %861 = vmatprep.subr.bf16.mxu0 0
        %862 = vmatpush1.bf16.msra.mxu0 0
        %863 = vmatprep.mubr.bf16.mxu0 0
        %864 = vmatmul.mubr.bf16.gmra.mrb[0].mxu0 %v826
        %v865 = vpop.f32.mrb[0].mxu0
        %v866 = vadd.f32 0.0, %v865
        %v867 = vpop.f32.mrb[0].mxu0
        %v868 = vpop.f32.mrb[0].mxu0
        %v869 = vpop.f32.mrb[0].mxu0
        %870 = vdwg.mxu0
        %871 = vst.msk [vmem:[#allocation2] sm:$0xff] %vm436, %v722
        %873 = vrot.lane.b32.xlu0 %v770, 8
        %v874 = vpop.permute.xlu0 %873
        %vm876 = vcmask 130112
        %877 = vst.msk [vmem:[#allocation2] sm:$0xff] %vm876, %v874
        %879 = vrot.lane.b32.xlu0 %v818, 16
        %v880 = vpop.permute.xlu0 %879
        %vm882 = vcmask 195712
        %883 = vst.msk [vmem:[#allocation2] sm:$0xff] %vm882, %v880
        %885 = vrot.lane.b32.xlu0 %v866, 24
        %v886 = vpop.permute.xlu0 %885
        %vm888 = vcmask 261312
        %889 = vst.msk [vmem:[#allocation2] sm:$0xff] %vm888, %v886
        %v890 = vld [vmem:[#allocation2] sm:$0xff]
        %v891 = vpack.c.bf16 %v890, %v890
        %v892 = vld [vmem:[#allocation9] sm:$0xf]
        %v893 = vld [vmem:[#allocation9 + $0x4] sm:$0xf]
        %v894 = vld [vmem:[#allocation9 + $0x8] sm:$0xf]
        %v895 = vld [vmem:[#allocation9 + $0xc] sm:$0xf]
        %v896 = vld [vmem:[#allocation11] sm:$0x1]
        %v898 = vlaneseq
        %v899 = vshrl.u32 %v898, 7
        %v900 = vsub.s32 0, %v899
        %v901 = vrot.slane %v896, %v900
        %v907 = vunpack.c.l.b16 %v892
        %v908 = vunpack.c.l.b16 %v893
        %v909 = vunpack.c.l.b16 %v894
        %v910 = vunpack.c.l.b16 %v895
        %v911 = vpack.c.b16 %v908, %v907
        %v912 = vpack.c.b16 %v910, %v909
        %v916 = vsel %vm359, %v891, 0
        %918 = vmatprep.subr.bf16.mxu0 0
        %919 = vmatpush1.bf16.msra.mxu0 %v911
        %920 = vmatprep.subr.bf16.mxu0 0
        %921 = vmatpush1.bf16.msra.mxu0 %v912
        %922 = vmatprep.subr.bf16.mxu0 0
        %923 = vmatpush1.bf16.msra.mxu0 0
        %924 = vmatprep.subr.bf16.mxu0 0
        %925 = vmatpush1.bf16.msra.mxu0 0
        %926 = vmatprep.subr.bf16.mxu0 0
        %927 = vmatpush1.bf16.msra.mxu0 0
        %928 = vmatprep.subr.bf16.mxu0 0
        %929 = vmatpush1.bf16.msra.mxu0 0
        %930 = vmatprep.subr.bf16.mxu0 0
        %931 = vmatpush1.bf16.msra.mxu0 0
        %932 = vmatprep.subr.bf16.mxu0 0
        %933 = vmatpush1.bf16.msra.mxu0 0
        %934 = vmatprep.subr.bf16.mxu0 0
        %935 = vmatpush1.bf16.msra.mxu0 0
        %936 = vmatprep.subr.bf16.mxu0 0
        %937 = vmatpush1.bf16.msra.mxu0 0
        %938 = vmatprep.subr.bf16.mxu0 0
        %939 = vmatpush1.bf16.msra.mxu0 0
        %940 = vmatprep.subr.bf16.mxu0 0
        %941 = vmatpush1.bf16.msra.mxu0 0
        %942 = vmatprep.subr.bf16.mxu0 0
        %943 = vmatpush1.bf16.msra.mxu0 0
        %944 = vmatprep.subr.bf16.mxu0 0
        %945 = vmatpush1.bf16.msra.mxu0 0
        %946 = vmatprep.subr.bf16.mxu0 0
        %947 = vmatpush1.bf16.msra.mxu0 0
        %948 = vmatprep.subr.bf16.mxu0 0
        %949 = vmatpush1.bf16.msra.mxu0 0
        %950 = vmatprep.mubr.bf16.mxu0 0
        %951 = vmatmul.mubr.bf16.gmra.mrb[0].mxu0 %v916
        %v952 = vpop.f32.mrb[0].mxu0
        %v953 = vadd.f32 %v901, %v952
        %v954 = vpop.f32.mrb[0].mxu0
        %v955 = vpop.f32.mrb[0].mxu0
        %v956 = vpop.f32.mrb[0].mxu0
        %957 = vdwg.mxu0
        %958 = vst.msk [vmem:[%s333] sm:$0xff] %vm359, %v953
        %s959 = sand.u32 %s165, 1
        %s960 = scalar_lea.sflag [#allocation5], %s959
        %s961 = sand.u32 %s165, 1
        %s962 = smul.addr %s961, 8
        %s963 = scalar_lea.vmem [#allocation14], %s962
        // Predicated region
        $region69: #{tpu_custom_call.1} parent=43 // pred_check
          %p964 = pneg %p175
        $region70: #{tpu_custom_call.1} parent=43 // pred_check_branch
          %966 = sbr.rel (%p964) target = $region72
        $region71: #{tpu_custom_call.1} parent=43 // pred_region
          %s968 = ssub.s32 128, 128
          %969 = vsyncadd %s960, %s968
          %s970 = smul.addr %s26, 128
          %s971 = scalar_lea.hbm %s6, %s970
          %s973 = sshll.u32 %s963, 4
          %s974 = int_to_ptr.vmem [resolvable:$true] %s973
          %976 = dma.vmem_to_hbm [thread:$0]  %s974, 128, %s971, %s960
        $region72: #{tpu_custom_call.1} parent=43 // pred_fallthru
          _
      $region44: #{tpu_custom_call.1} parent=5 // pred_fallthru
        _
      %p977 = scmp.le.s32.totalorder 2, %s21
      // Predicated region
      $region73: #{tpu_custom_call.1} parent=5 // pred_check
        %p978 = pneg %p977
      $region74: #{tpu_custom_call.1} parent=5 // pred_check_branch
        %980 = sbr.rel (%p978) target = $region76
      $region75: #{tpu_custom_call.1} parent=5 // pred_region
        %s981 = ssub.s32 %s21, 2
        // Predicated region
        $region77: #{tpu_custom_call.1} parent=75 // pred_check
          %p982 = pneg %p181
        $region78: #{tpu_custom_call.1} parent=75 // pred_check_branch
          %984 = sbr.rel (%p982) target = $region80
        $region79: #{tpu_custom_call.1} parent=75 // pred_region
          %s985 = sand.u32 %s166, 1
          %s986 = scalar_lea.sflag [#allocation5], %s985
          %s987 = sand.u32 %s166, 1
          %s988 = smul.addr %s987, 8
          %s989 = scalar_lea.vmem [#allocation14], %s988
          %990 = dma.done %s986, 128
        $region80: #{tpu_custom_call.1} parent=75 // pred_fallthru
          _
      $region76: #{tpu_custom_call.1} parent=5 // pred_fallthru
        _
    $region6: #{tpu_custom_call.1} parent=1 // loop_footer
      %s25 = sadd.s32 1, %s21
    $region7: #{tpu_custom_call.1} parent=1 // loop_footer_branch
      %20 = sbr.rel target = $region3
    $region8: #{tpu_custom_call.1} parent=1 // loop_exit
      _
    %991 = vsyncpa [#allocation4], 1
    %s992 = scalar_lea.sflag [#allocation4], 1
    %993 = vsyncpa %s992, 1
    %994 = vsyncpa [#allocation7], 1
    %995 = vsyncpa [#allocation10], 1
    %996 = vsyncpa [#allocation13], 1
    %997 = vsyncpa [#allocation5], 1
    %s998 = scalar_lea.sflag [#allocation5], 1
    %999 = vsyncpa %s998, 1

</llo_original>
